<compile_context>
chip_gen: v7x
topology: tpu7x:2x2x1
jax: 0.10.0
libtpu: 0.0.40
codegen_flags: <defaults>
</compile_context>

<pallas_src>
import functools

import jax
import jax.numpy as jnp
from jax.experimental import pallas as pl
from jax.experimental.pallas import tpu as pltpu


def _fcn_kernel(x_ref, w_in_ref, b_in_ref, w_h_ref, b_h_ref,
                w_out_ref, b_out_ref, o_ref, *,
                n_hidden_layers, n_in, lane_chunks):
    # x_ref:    (N_IN, TB)     batch on lanes
    # w_in_ref: (H, N_IN)      PyTorch (out, in) order
    # b_in_ref: (H, 1)
    # w_h_ref:  (L-1, H, H)
    # b_h_ref:  (L-1, H, 1)
    # w_out_ref:(N_OUT, H)
    # b_out_ref:(N_OUT, 1)
    # o_ref:    (N_OUT, TB)    lane-dense output
    tile_b = o_ref.shape[-1]
    cb = tile_b // lane_chunks

    w_in = w_in_ref[...]
    b_in = b_in_ref[...]
    w_out = w_out_ref[...]
    b_out = b_out_ref[...]

    # --- Input layer, per lane-chunk ------------------------------------
    hs = []
    for c in range(lane_chunks):
        xc = x_ref[:, c * cb:(c + 1) * cb]
        if n_in == 1:
            # Contraction depth 1 => outer product on the VPU instead of a
            # degenerate MXU push/drain: (H,1) * (1,CB) + (H,1).
            hs.append(jnp.tanh(w_in * xc + b_in))
        else:
            hs.append(jnp.tanh(
                jnp.dot(w_in, xc, preferred_element_type=jnp.float32) + b_in))

    # --- Hidden layers: (H,H) @ (H,CB) on the MXU ------------------------
    # All chunk matmuls are issued before any tanh of that layer: the chunk
    # chains are independent, so the scheduler can hide MXU time under EUP.
    for l in range(n_hidden_layers):
        w_l = w_h_ref[l]
        b_l = b_h_ref[l]
        zs = [jnp.dot(w_l, hs[c], preferred_element_type=jnp.float32) + b_l
              for c in range(lane_chunks)]
        hs = [jnp.tanh(z) for z in zs]

    # --- Output layer: (N_OUT,H) @ (H,CB) -> lane-dense store -------------
    for c in range(lane_chunks):
        o_ref[:, c * cb:(c + 1) * cb] = (
            jnp.dot(w_out, hs[c], preferred_element_type=jnp.float32) + b_out
        ).astype(o_ref.dtype)


# Lanes per grid step.  Fixed cap keeps VMEM flat for arbitrarily large
# batches (32*2048*4B = 256 KiB live activation) while staying well on the
# >=512-lane efficiency plateau.
_TILE_B_CAP = 2048


def fcn_forward_pallas(x, params, *, tile_b_cap=_TILE_B_CAP):
    """x: (N, N_INPUT) float32. Returns (N, N_OUTPUT) float32."""
    w_in, b_in, w_h, b_h, w_out, b_out = params
    n, n_in = x.shape
    n_hidden = w_in.shape[0]
    n_hid_layers = w_h.shape[0]
    n_out = w_out.shape[0]

    # Batch-on-lanes input (N_IN, N).  For N_IN == 1 this is a free reshape.
    # No padding: the ragged last grid block covers N % 128 != 0.
    xt = x.reshape(1, n) if n_in == 1 else x.T

    # Tile the lane axis: tile_b is a multiple of 128, capped, and the grid
    # grows with N instead of the tile.
    tile_b = min(int(tile_b_cap), pl.cdiv(n, 128) * 128)
    grid = (pl.cdiv(n, tile_b),)
    # Intra-kernel 2-way lane chunking only pays once tiles are big enough
    # that per-step overhead no longer dominates (and keeps chunks 128-dense).
    lane_chunks = 2 if (tile_b >= 1024 and tile_b % 256 == 0) else 1

    kernel = functools.partial(
        _fcn_kernel, n_hidden_layers=n_hid_layers, n_in=n_in,
        lane_chunks=lane_chunks)

    # Advisory cost estimate so XLA schedules the tiny custom call sensibly.
    flops = 2 * n * n_hidden * (n_in + n_hid_layers * n_hidden + n_out)
    transcendentals = n * n_hidden * (n_hid_layers + 1)
    bytes_accessed = 4 * (
        n_in * n + n_out * n
        + n_hidden * n_in + n_hidden
        + n_hid_layers * n_hidden * n_hidden + n_hid_layers * n_hidden
        + n_out * n_hidden + n_out
    )
    cost = pl.CostEstimate(
        flops=int(flops),
        transcendentals=int(transcendentals),
        bytes_accessed=int(bytes_accessed),
    )

    out_t = pl.pallas_call(
        kernel,
        out_shape=jax.ShapeDtypeStruct((n_out, n), jnp.float32),
        grid_spec=pltpu.PrefetchScalarGridSpec(
            num_scalar_prefetch=0,
            grid=grid,
            in_specs=[
                pl.BlockSpec((n_in, tile_b), lambda i: (0, i)),        # x tile
                pl.BlockSpec((n_hidden, n_in), lambda i: (0, 0)),      # W_in
                pl.BlockSpec((n_hidden, 1), lambda i: (0, 0)),         # b_in
                pl.BlockSpec((n_hid_layers, n_hidden, n_hidden),
                             lambda i: (0, 0, 0)),                     # W_h stack
                pl.BlockSpec((n_hid_layers, n_hidden, 1),
                             lambda i: (0, 0, 0)),                     # b_h stack
                pl.BlockSpec((n_out, n_hidden), lambda i: (0, 0)),     # W_out
                pl.BlockSpec((n_out, 1), lambda i: (0, 0)),            # b_out
            ],
            out_specs=pl.BlockSpec((n_out, tile_b), lambda i: (0, i)),
        ),
        compiler_params=pltpu.CompilerParams(
            dimension_semantics=("parallel",)
        ),
        cost_estimate=cost,
    )(xt, w_in, b_in, w_h, b_h, w_out, b_out)

    # Back to the PyTorch (N, N_OUT) layout (free reshape when N_OUT == 1).
    return out_t.reshape(n, 1) if n_out == 1 else out_t.T


def init_fcn_params(key, n_input, n_output, n_hidden, n_layers):
    """Deterministic init mimicking nn.Linear's U(-1/sqrt(fan_in), 1/sqrt(fan_in)).

    Weights stored in PyTorch (out_features, in_features) order; biases as
    (out_features, 1) columns (broadcast over the lane/batch axis)."""
    ks = jax.random.split(key, 6)

    def uni(k, shape, fan_in):
        bound = 1.0 / jnp.sqrt(fan_in)
        return jax.random.uniform(k, shape, jnp.float32, -bound, bound)

    w_in = uni(ks[0], (n_hidden, n_input), n_input)
    b_in = uni(ks[1], (n_hidden, 1), n_input)
    w_h = uni(ks[2], (n_layers - 1, n_hidden, n_hidden), n_hidden)
    b_h = uni(ks[3], (n_layers - 1, n_hidden, 1), n_hidden)
    w_out = uni(ks[4], (n_output, n_hidden), n_hidden)
    b_out = uni(ks[5], (n_output, 1), n_hidden)
    return w_in, b_in, w_h, b_h, w_out, b_out


def fcn_forward_ref(x, params):
    """Pure-JAX reference (same math as the PyTorch module)."""
    w_in, b_in, w_h, b_h, w_out, b_out = params
    h = jnp.tanh(x @ w_in.T + b_in[:, 0])
    for l in range(w_h.shape[0]):
        h = jnp.tanh(h @ w_h[l].T + b_h[l, :, 0])
    return h @ w_out.T + b_out[:, 0]


if __name__ == "__main__":
    # Shapes matching the PINN script: x = linspace(0, 1, 500).view(-1, 1),
    # FCN(N_INPUT=1, N_OUTPUT=1, N_HIDDEN=32, N_LAYERS=3).
    N, N_INPUT, N_OUTPUT, N_HIDDEN, N_LAYERS = 500, 1, 1, 32, 3

    key = jax.random.PRNGKey(0)
    params = init_fcn_params(key, N_INPUT, N_OUTPUT, N_HIDDEN, N_LAYERS)

    # Reference problem size (single grid step, ragged 500-lane block).
    x_small = jnp.linspace(0.0, 1.0, N, dtype=jnp.float32).reshape(-1, 1)
    out_small = jax.block_until_ready(fcn_forward_pallas(x_small, params))
    ref_small = fcn_forward_ref(x_small, params)
    assert out_small.shape == (N, N_OUTPUT), out_small.shape
    assert jnp.allclose(out_small, ref_small, atol=1e-5, rtol=1e-5), (
        float(jnp.max(jnp.abs(out_small - ref_small)))
    )

    # Larger collocation batch: exercises multi-step grid, capped tile,
    # ragged last block, and 2-way intra-kernel lane chunking.
    N_BIG = 5000
    x_big = jnp.linspace(0.0, 1.0, N_BIG, dtype=jnp.float32).reshape(-1, 1)
    out_big = jax.block_until_ready(fcn_forward_pallas(x_big, params))
    ref_big = fcn_forward_ref(x_big, params)
    assert out_big.shape == (N_BIG, N_OUTPUT), out_big.shape
    assert jnp.allclose(out_big, ref_big, atol=1e-5, rtol=1e-5), (
        float(jnp.max(jnp.abs(out_big - ref_big)))
    )

    print("KERNEL_OK")
</pallas_src>

<mosaic_0001>
module attributes {stable_mosaic.version = 11 : i64} {
  func.func @_fcn_kernel(%arg0: i32, %arg1: memref<1x512xf32, #tpu.memory_space<vmem>>, %arg2: memref<32x1xf32, #tpu.memory_space<vmem>>, %arg3: memref<32x1xf32, #tpu.memory_space<vmem>>, %arg4: memref<2x32x32xf32, #tpu.memory_space<vmem>>, %arg5: memref<2x32x1xf32, #tpu.memory_space<vmem>>, %arg6: memref<1x32xf32, #tpu.memory_space<vmem>>, %arg7: memref<1x1xf32, #tpu.memory_space<vmem>>, %arg8: memref<1x512xf32, #tpu.memory_space<vmem>>) attributes {dimension_semantics = [#tpu.dimension_semantics<parallel>], iteration_bounds = array<i64: 1>, scalar_prefetch = 0 : i64, scratch_operands = 0 : i64, tpu.core_type = #tpu.core_type<tc>, window_params = [{transform_indices = @transform_0, window_bounds = array<i64: 1, 512>}, {pipeline_mode = #tpu.pipeline_mode<synchronous>, transform_indices = @transform_1, window_bounds = array<i64: 32, 1>}, {pipeline_mode = #tpu.pipeline_mode<synchronous>, transform_indices = @transform_2, window_bounds = array<i64: 32, 1>}, {pipeline_mode = #tpu.pipeline_mode<synchronous>, transform_indices = @transform_3, window_bounds = array<i64: 2, 32, 32>}, {pipeline_mode = #tpu.pipeline_mode<synchronous>, transform_indices = @transform_4, window_bounds = array<i64: 2, 32, 1>}, {pipeline_mode = #tpu.pipeline_mode<synchronous>, transform_indices = @transform_5, window_bounds = array<i64: 1, 32>}, {pipeline_mode = #tpu.pipeline_mode<synchronous>, transform_indices = @transform_6, window_bounds = array<i64: 1, 1>}, {transform_indices = @transform_7, window_bounds = array<i64: 1, 512>}]} {
    %c0 = arith.constant 0 : index
    %c0_0 = arith.constant 0 : index
    %0 = vector.load %arg2[%c0, %c0_0] : memref<32x1xf32, #tpu.memory_space<vmem>>, vector<32x1xf32>
    %c0_1 = arith.constant 0 : index
    %c0_2 = arith.constant 0 : index
    %1 = vector.load %arg3[%c0_1, %c0_2] : memref<32x1xf32, #tpu.memory_space<vmem>>, vector<32x1xf32>
    %c0_3 = arith.constant 0 : index
    %c0_4 = arith.constant 0 : index
    %2 = vector.load %arg6[%c0_3, %c0_4] : memref<1x32xf32, #tpu.memory_space<vmem>>, vector<1x32xf32>
    %c0_5 = arith.constant 0 : index
    %c0_6 = arith.constant 0 : index
    %3 = vector.load %arg7[%c0_5, %c0_6] : memref<1x1xf32, #tpu.memory_space<vmem>>, vector<1x1xf32>
    %c0_7 = arith.constant 0 : index
    %c0_8 = arith.constant 0 : index
    %4 = vector.load %arg1[%c0_7, %c0_8] : memref<1x512xf32, #tpu.memory_space<vmem>>, vector<1x512xf32>
    %5 = vector.broadcast %0 : vector<32x1xf32> to vector<32x512xf32>
    %6 = vector.broadcast %4 : vector<1x512xf32> to vector<32x512xf32>
    %7 = arith.mulf %5, %6 : vector<32x512xf32>
    %8 = vector.broadcast %1 : vector<32x1xf32> to vector<32x512xf32>
    %9 = arith.addf %7, %8 : vector<32x512xf32>
    %10 = math.tanh %9 : vector<32x512xf32>
    %c0_9 = arith.constant 0 : index
    %c0_10 = arith.constant 0 : index
    %c0_11 = arith.constant 0 : index
    %11 = vector.load %arg4[%c0_9, %c0_10, %c0_11] : memref<2x32x32xf32, #tpu.memory_space<vmem>>, vector<1x32x32xf32>
    %12 = vector.shape_cast %11 : vector<1x32x32xf32> to vector<32x32xf32>
    %c0_12 = arith.constant 0 : index
    %c0_13 = arith.constant 0 : index
    %c0_14 = arith.constant 0 : index
    %13 = vector.load %arg5[%c0_12, %c0_13, %c0_14] : memref<2x32x1xf32, #tpu.memory_space<vmem>>, vector<1x32x1xf32>
    %14 = vector.shape_cast %13 : vector<1x32x1xf32> to vector<32x1xf32>
    %cst = arith.constant dense<0.000000e+00> : vector<32x512xf32>
    %15 = tpu.matmul %12, %10, %cst {dimension_numbers = #tpu.dot_dimension_numbers<[1], [0], [0], [1], [0, 0, 1, 1], [], []>} : vector<32x32xf32>, vector<32x512xf32>, vector<32x512xf32> -> vector<32x512xf32>
    %16 = vector.broadcast %14 : vector<32x1xf32> to vector<32x512xf32>
    %17 = arith.addf %15, %16 : vector<32x512xf32>
    %18 = math.tanh %17 : vector<32x512xf32>
    %c1 = arith.constant 1 : index
    %c0_15 = arith.constant 0 : index
    %c0_16 = arith.constant 0 : index
    %19 = vector.load %arg4[%c1, %c0_15, %c0_16] : memref<2x32x32xf32, #tpu.memory_space<vmem>>, vector<1x32x32xf32>
    %20 = vector.shape_cast %19 : vector<1x32x32xf32> to vector<32x32xf32>
    %c1_17 = arith.constant 1 : index
    %c0_18 = arith.constant 0 : index
    %c0_19 = arith.constant 0 : index
    %21 = vector.load %arg5[%c1_17, %c0_18, %c0_19] : memref<2x32x1xf32, #tpu.memory_space<vmem>>, vector<1x32x1xf32>
    %22 = vector.shape_cast %21 : vector<1x32x1xf32> to vector<32x1xf32>
    %cst_20 = arith.constant dense<0.000000e+00> : vector<32x512xf32>
    %23 = tpu.matmul %20, %18, %cst_20 {dimension_numbers = #tpu.dot_dimension_numbers<[1], [0], [0], [1], [0, 0, 1, 1], [], []>} : vector<32x32xf32>, vector<32x512xf32>, vector<32x512xf32> -> vector<32x512xf32>
    %24 = vector.broadcast %22 : vector<32x1xf32> to vector<32x512xf32>
    %25 = arith.addf %23, %24 : vector<32x512xf32>
    %26 = math.tanh %25 : vector<32x512xf32>
    %cst_21 = arith.constant dense<0.000000e+00> : vector<1x512xf32>
    %27 = tpu.matmul %2, %26, %cst_21 {dimension_numbers = #tpu.dot_dimension_numbers<[1], [0], [0], [1], [0, 0, 1, 1], [], []>} : vector<1x32xf32>, vector<32x512xf32>, vector<1x512xf32> -> vector<1x512xf32>
    %28 = vector.broadcast %3 : vector<1x1xf32> to vector<1x512xf32>
    %29 = arith.addf %27, %28 : vector<1x512xf32>
    %c0_22 = arith.constant 0 : index
    %c0_23 = arith.constant 0 : index
    %30 = vector.load %arg8[%c0_22, %c0_23] : memref<1x512xf32, #tpu.memory_space<vmem>>, vector<1x512xf32>
    tpu.vector_store %arg8[%c0_22, %c0_23], %29 {strides = array<i32>} : memref<1x512xf32, #tpu.memory_space<vmem>>, vector<1x512xf32>,
    return
  }
  func.func @transform_0(%arg0: i32) -> (i32, i32) {
    %c0_i32 = arith.constant 0 : i32
    %c0_i32_0 = arith.constant 0 : i32
    return %c0_i32, %arg0 : i32, i32
  }
  func.func @transform_1(%arg0: i32) -> (i32, i32) {
    %c0_i32 = arith.constant 0 : i32
    %c0_i32_0 = arith.constant 0 : i32
    %c0_i32_1 = arith.constant 0 : i32
    return %c0_i32, %c0_i32_0 : i32, i32
  }
  func.func @transform_2(%arg0: i32) -> (i32, i32) {
    %c0_i32 = arith.constant 0 : i32
    %c0_i32_0 = arith.constant 0 : i32
    %c0_i32_1 = arith.constant 0 : i32
    return %c0_i32, %c0_i32_0 : i32, i32
  }
  func.func @transform_3(%arg0: i32) -> (i32, i32, i32) {
    %c0_i32 = arith.constant 0 : i32
    %c0_i32_0 = arith.constant 0 : i32
    %c0_i32_1 = arith.constant 0 : i32
    %c0_i32_2 = arith.constant 0 : i32
    return %c0_i32, %c0_i32_0, %c0_i32_1 : i32, i32, i32
  }
  func.func @transform_4(%arg0: i32) -> (i32, i32, i32) {
    %c0_i32 = arith.constant 0 : i32
    %c0_i32_0 = arith.constant 0 : i32
    %c0_i32_1 = arith.constant 0 : i32
    %c0_i32_2 = arith.constant 0 : i32
    return %c0_i32, %c0_i32_0, %c0_i32_1 : i32, i32, i32
  }
  func.func @transform_5(%arg0: i32) -> (i32, i32) {
    %c0_i32 = arith.constant 0 : i32
    %c0_i32_0 = arith.constant 0 : i32
    %c0_i32_1 = arith.constant 0 : i32
    return %c0_i32, %c0_i32_0 : i32, i32
  }
  func.func @transform_6(%arg0: i32) -> (i32, i32) {
    %c0_i32 = arith.constant 0 : i32
    %c0_i32_0 = arith.constant 0 : i32
    %c0_i32_1 = arith.constant 0 : i32
    return %c0_i32, %c0_i32_0 : i32, i32
  }
  func.func @transform_7(%arg0: i32) -> (i32, i32) {
    %c0_i32 = arith.constant 0 : i32
    %c0_i32_0 = arith.constant 0 : i32
    return %c0_i32, %arg0 : i32, i32
  }
}

</mosaic_0001>

<llo_original>
// kernel: tpu_custom_call.1
$region0: #{tpu_custom_call.1}
  #allocation0 [shape = 'u32[]', space=smem, size = 0x4, offset = 0x4, fixed_abs, tag = 'smem constant byte address 0x4 - core index']
  #allocation1 [shape = 'u32[144,128]{1,0:T(1,128)}', space=vmem, size = 0x12000, scoped, tag = 'internal scratch']
  #allocation2 [shape = 'f32[1,1]{1,0:T(1,128)S(1)}', space=vmem, size = 0x200, scoped, tag = 'scoped memory for tpu_custom_call.1']
  %s0 = inlined_call_operand.vmem [shape: f32[1,500], index: 0, kind: input, shape index: {}]
  %s1 = inlined_call_operand.vmem [shape: f32[32,1], index: 1, kind: input, shape index: {}]
  %s2 = inlined_call_operand.vmem [shape: f32[32,1], index: 2, kind: input, shape index: {}]
  %s3 = inlined_call_operand.vmem [shape: f32[2,32,32], index: 3, kind: input, shape index: {}]
  %s4 = inlined_call_operand.vmem [shape: f32[2,32,1], index: 4, kind: input, shape index: {}]
  %s5 = inlined_call_operand.vmem [shape: f32[1,32], index: 5, kind: input, shape index: {}]
  %s6 = inlined_call_operand.<no memory space> [shape: f32[1,1], index: 6, kind: input, shape index: {}]
  %s7 = inlined_call_operand.hbm [shape: f32[1,500], index: 7, kind: output, shape index: {}]
  %s8 = sld [smem:[#allocation0]]
  $region38: #{tpu_custom_call.1} parent=0
    _
  %s10 = ssub.s32 1, %s8
  %s11 = scalar_select 0, %s10, %s8
  %v12 = vstv %s6
  %13 = vst [vmem:[#allocation2] sm:$0x1] %v12
  $region1: #{tpu_custom_call.1} parent=0
    #allocation3 [shape = 'u8[2048]{0}', space=vmem, size = 0x800, scoped, tag = 'output window, operand 0, single buffered']
    #allocation4 [shape = 's32[1]{0}', space=sflag, size = 0x4, scoped, tag = 'scoped memory for tpu_custom_call.1']
    %14 = vsyncpa [#allocation4], 0
    // Predicated region
    $region2: #{tpu_custom_call.1} parent=1 // pred_check
      _
    $region3: #{tpu_custom_call.1} parent=1 // pred_check_branch
      %16 = sbr.rel (0) target = $region5
    $region4: #{tpu_custom_call.1} parent=1 // pred_region
      _
    $region5: #{tpu_custom_call.1} parent=1 // pred_fallthru
      _
    // Predicated region
    $region6: #{tpu_custom_call.1} parent=1 // pred_check
      _
    $region7: #{tpu_custom_call.1} parent=1 // pred_check_branch
      %18 = sbr.rel (0) target = $region9
    $region8: #{tpu_custom_call.1} parent=1 // pred_region
      _
    $region9: #{tpu_custom_call.1} parent=1 // pred_fallthru
      _
    // Predicated region
    $region10: #{tpu_custom_call.1} parent=1 // pred_check
      _
    $region11: #{tpu_custom_call.1} parent=1 // pred_check_branch
      %20 = sbr.rel (0) target = $region13
    $region12: #{tpu_custom_call.1} parent=1 // pred_region
      _
    $region13: #{tpu_custom_call.1} parent=1 // pred_fallthru
      _
    // Predicated region
    $region14: #{tpu_custom_call.1} parent=1 // pred_check
      _
    $region15: #{tpu_custom_call.1} parent=1 // pred_check_branch
      %22 = sbr.rel (0) target = $region17
    $region16: #{tpu_custom_call.1} parent=1 // pred_region
      _
    $region17: #{tpu_custom_call.1} parent=1 // pred_fallthru
      _
    // Predicated region
    $region18: #{tpu_custom_call.1} parent=1 // pred_check
      _
    $region19: #{tpu_custom_call.1} parent=1 // pred_check_branch
      %24 = sbr.rel (0) target = $region21
    $region20: #{tpu_custom_call.1} parent=1 // pred_region
      _
    $region21: #{tpu_custom_call.1} parent=1 // pred_fallthru
      _
    // Predicated region
    $region22: #{tpu_custom_call.1} parent=1 // pred_check
      _
    $region23: #{tpu_custom_call.1} parent=1 // pred_check_branch
      %26 = sbr.rel (0) target = $region25
    $region24: #{tpu_custom_call.1} parent=1 // pred_region
      _
    $region25: #{tpu_custom_call.1} parent=1 // pred_fallthru
      _
    // Predicated region
    $region26: #{tpu_custom_call.1} parent=1 // pred_check
      _
    $region27: #{tpu_custom_call.1} parent=1 // pred_check_branch
      %28 = sbr.rel (0) target = $region29
    $region28: #{tpu_custom_call.1} parent=1 // pred_region
      _
    $region29: #{tpu_custom_call.1} parent=1 // pred_fallthru
      _
    %v29 = vld [vmem:[%s1] sm:$0xff]
    %v30 = vld [vmem:[%s1 + $0x8] sm:$0xff]
    %v31 = vld [vmem:[%s1 + $0x10] sm:$0xff]
    %v32 = vld [vmem:[%s1 + $0x18] sm:$0xff]
    %v33 = vld [vmem:[%s2] sm:$0xff]
    %v34 = vld [vmem:[%s2 + $0x8] sm:$0xff]
    %v35 = vld [vmem:[%s2 + $0x10] sm:$0xff]
    %v36 = vld [vmem:[%s2 + $0x18] sm:$0xff]
    %v37 = vld [vmem:[%s5] sm:$0x1]
    %v38 = vld [vmem:[#allocation2] sm:$0x1]
    %v39 = vld [vmem:[%s0] sm:$0xf]
    %41 = vset.pattern.permute.xlu0 0
    %42 = vperm.xlu0 %41, %v29
    %v43 = vpop.permute.xlu0 %42
    %46 = vset.pattern.permute.xlu0 0
    %47 = vperm.xlu0 %46, %v30
    %v48 = vpop.permute.xlu0 %47
    %51 = vset.pattern.permute.xlu0 0
    %52 = vperm.xlu0 %51, %v31
    %v53 = vpop.permute.xlu0 %52
    %56 = vset.pattern.permute.xlu0 0
    %57 = vperm.xlu0 %56, %v32
    %v58 = vpop.permute.xlu0 %57
    %v61 = vlaneseq
    %v62 = vshrl.u32 %v61, 7
    %v63 = vsub.s32 0, %v62
    %v64 = vrot.slane %v39, %v63
    %v65 = vlaneseq
    %v66 = vshrl.u32 %v65, 7
    %v67 = vsub.s32 1, %v66
    %v68 = vrot.slane %v39, %v67
    %v69 = vlaneseq
    %v70 = vshrl.u32 %v69, 7
    %v71 = vsub.s32 2, %v70
    %v72 = vrot.slane %v39, %v71
    %v73 = vlaneseq
    %v74 = vshrl.u32 %v73, 7
    %v75 = vsub.s32 3, %v74
    %v76 = vrot.slane %v39, %v75
    %v81 = vmul.f32 %v43, %v64
    %v82 = vmul.f32 %v43, %v68
    %v83 = vmul.f32 %v43, %v72
    %v84 = vmul.f32 %v43, %v76
    %v85 = vmul.f32 %v48, %v64
    %v86 = vmul.f32 %v48, %v68
    %v87 = vmul.f32 %v48, %v72
    %v88 = vmul.f32 %v48, %v76
    %v89 = vmul.f32 %v53, %v64
    %v90 = vmul.f32 %v53, %v68
    %v91 = vmul.f32 %v53, %v72
    %v92 = vmul.f32 %v53, %v76
    %v93 = vmul.f32 %v58, %v64
    %v94 = vmul.f32 %v58, %v68
    %v95 = vmul.f32 %v58, %v72
    %v96 = vmul.f32 %v58, %v76
    %98 = vset.pattern.permute.xlu0 0
    %99 = vperm.xlu0 %98, %v33
    %v100 = vpop.permute.xlu0 %99
    %103 = vset.pattern.permute.xlu0 0
    %104 = vperm.xlu0 %103, %v34
    %v105 = vpop.permute.xlu0 %104
    %108 = vset.pattern.permute.xlu0 0
    %109 = vperm.xlu0 %108, %v35
    %v110 = vpop.permute.xlu0 %109
    %113 = vset.pattern.permute.xlu0 0
    %114 = vperm.xlu0 %113, %v36
    %v115 = vpop.permute.xlu0 %114
    %v117 = vadd.f32 %v81, %v100
    %v118 = vadd.f32 %v82, %v100
    %v119 = vadd.f32 %v83, %v100
    %v120 = vadd.f32 %v84, %v100
    %v121 = vadd.f32 %v85, %v105
    %v122 = vadd.f32 %v86, %v105
    %v123 = vadd.f32 %v87, %v105
    %v124 = vadd.f32 %v88, %v105
    %v125 = vadd.f32 %v89, %v110
    %v126 = vadd.f32 %v90, %v110
    %v127 = vadd.f32 %v91, %v110
    %v128 = vadd.f32 %v92, %v110
    %v129 = vadd.f32 %v93, %v115
    %v130 = vadd.f32 %v94, %v115
    %v131 = vadd.f32 %v95, %v115
    %v132 = vadd.f32 %v96, %v115
    %v133 = vtanh.pop %v117
    %v134 = vtanh.pop %v118
    %v135 = vtanh.pop %v119
    %v136 = vtanh.pop %v120
    %v137 = vtanh.pop %v121
    %v138 = vtanh.pop %v122
    %v139 = vtanh.pop %v123
    %v140 = vtanh.pop %v124
    %v141 = vtanh.pop %v125
    %v142 = vtanh.pop %v126
    %v143 = vtanh.pop %v127
    %v144 = vtanh.pop %v128
    %v145 = vtanh.pop %v129
    %v146 = vtanh.pop %v130
    %v147 = vtanh.pop %v131
    %v148 = vtanh.pop %v132
    %v149 = vld [vmem:[%s3] sm:$0xff]
    %v150 = vld [vmem:[%s3 + $0x8] sm:$0xff]
    %v151 = vld [vmem:[%s3 + $0x10] sm:$0xff]
    %v152 = vld [vmem:[%s3 + $0x18] sm:$0xff]
    %v153 = vld [vmem:[%s4] sm:$0xff]
    %v154 = vld [vmem:[%s4 + $0x8] sm:$0xff]
    %v155 = vld [vmem:[%s4 + $0x10] sm:$0xff]
    %v156 = vld [vmem:[%s4 + $0x18] sm:$0xff]
    %158 = vset.pattern.permute.xlu0 0
    %159 = vperm.xlu0 %158, %v153
    %v160 = vpop.permute.xlu0 %159
    %163 = vset.pattern.permute.xlu0 0
    %164 = vperm.xlu0 %163, %v154
    %v165 = vpop.permute.xlu0 %164
    %168 = vset.pattern.permute.xlu0 0
    %169 = vperm.xlu0 %168, %v155
    %v170 = vpop.permute.xlu0 %169
    %173 = vset.pattern.permute.xlu0 0
    %174 = vperm.xlu0 %173, %v156
    %v175 = vpop.permute.xlu0 %174
    %vm177 = vcmask 261120
    %v179 = vsel %vm177, %v149, 0
    %v182 = vsel %vm177, %v150, 0
    %v185 = vsel %vm177, %v151, 0
    %v188 = vsel %vm177, %v152, 0
    %190 = vmatprep.subr.mxu0 %v134
    %191 = vmatpush1.msra.mxu0 %v133
    %192 = vmatprep.subr.mxu0 %v138
    %193 = vmatpush1.msra.mxu0 %v137
    %194 = vmatprep.subr.mxu0 %v142
    %195 = vmatpush1.msra.mxu0 %v141
    %196 = vmatprep.subr.mxu0 %v146
    %197 = vmatpush1.msra.mxu0 %v145
    %198 = vmatprep.subr.mxu0 0.0
    %199 = vmatpush1.msra.mxu0 0.0
    %200 = vmatprep.subr.mxu0 0.0
    %201 = vmatpush1.msra.mxu0 0.0
    %202 = vmatprep.subr.mxu0 0.0
    %203 = vmatpush1.msra.mxu0 0.0
    %204 = vmatprep.subr.mxu0 0.0
    %205 = vmatpush1.msra.mxu0 0.0
    %206 = vmatprep.subr.mxu0 0.0
    %207 = vmatpush1.msra.mxu0 0.0
    %208 = vmatprep.subr.mxu0 0.0
    %209 = vmatpush1.msra.mxu0 0.0
    %210 = vmatprep.subr.mxu0 0.0
    %211 = vmatpush1.msra.mxu0 0.0
    %212 = vmatprep.subr.mxu0 0.0
    %213 = vmatpush1.msra.mxu0 0.0
    %214 = vmatprep.subr.mxu0 0.0
    %215 = vmatpush1.msra.mxu0 0.0
    %216 = vmatprep.subr.mxu0 0.0
    %217 = vmatpush1.msra.mxu0 0.0
    %218 = vmatprep.subr.mxu0 0.0
    %219 = vmatpush1.msra.mxu0 0.0
    %220 = vmatprep.subr.mxu0 0.0
    %221 = vmatpush1.msra.mxu0 0.0
    %222 = vmatprep.subr.mxu0 0.0
    %223 = vmatpush1.msra.mxu0 0.0
    %224 = vmatprep.subr.mxu0 0.0
    %225 = vmatpush1.msra.mxu0 0.0
    %226 = vmatprep.subr.mxu0 0.0
    %227 = vmatpush1.msra.mxu0 0.0
    %228 = vmatprep.subr.mxu0 0.0
    %229 = vmatpush1.msra.mxu0 0.0
    %230 = vmatprep.subr.mxu0 0.0
    %231 = vmatpush1.msra.mxu0 0.0
    %232 = vmatprep.subr.mxu0 0.0
    %233 = vmatpush1.msra.mxu0 0.0
    %234 = vmatprep.subr.mxu0 0.0
    %235 = vmatpush1.msra.mxu0 0.0
    %236 = vmatprep.subr.mxu0 0.0
    %237 = vmatpush1.msra.mxu0 0.0
    %238 = vmatprep.subr.mxu0 0.0
    %239 = vmatpush1.msra.mxu0 0.0
    %240 = vmatprep.subr.mxu0 0.0
    %241 = vmatpush1.msra.mxu0 0.0
    %242 = vmatprep.subr.mxu0 0.0
    %243 = vmatpush1.msra.mxu0 0.0
    %244 = vmatprep.subr.mxu0 0.0
    %245 = vmatpush1.msra.mxu0 0.0
    %246 = vmatprep.subr.mxu0 0.0
    %247 = vmatpush1.msra.mxu0 0.0
    %248 = vmatprep.subr.mxu0 0.0
    %249 = vmatpush1.msra.mxu0 0.0
    %250 = vmatprep.subr.mxu0 0.0
    %251 = vmatpush1.msra.mxu0 0.0
    %252 = vmatprep.subr.mxu0 0.0
    %253 = vmatpush1.msra.mxu0 0.0
    %254 = vmatprep.mubr.f32.mxu0 0.0
    %255 = vmatmul.mubr.f32.gmra.mrb[0].mxu0 %v179
    %v256 = vpop.f32.mrb[0].mxu0
    %v257 = vadd.f32 %v160, %v256
    %v258 = vpop.f32.mrb[0].mxu0
    %v259 = vadd.f32 %v160, %v258
    %260 = vmatprep.mubr.f32.mxu0 0.0
    %261 = vmatmul.mubr.f32.gmra.mrb[0].mxu0 %v182
    %v262 = vpop.f32.mrb[0].mxu0
    %v263 = vadd.f32 %v165, %v262
    %v264 = vpop.f32.mrb[0].mxu0
    %v265 = vadd.f32 %v165, %v264
    %266 = vmatprep.mubr.f32.mxu0 0.0
    %267 = vmatmul.mubr.f32.gmra.mrb[0].mxu0 %v185
    %v268 = vpop.f32.mrb[0].mxu0
    %v269 = vadd.f32 %v170, %v268
    %v270 = vpop.f32.mrb[0].mxu0
    %v271 = vadd.f32 %v170, %v270
    %272 = vmatprep.mubr.f32.mxu0 0.0
    %273 = vmatmul.mubr.f32.gmra.mrb[0].mxu0 %v188
    %v274 = vpop.f32.mrb[0].mxu0
    %v275 = vadd.f32 %v175, %v274
    %v276 = vpop.f32.mrb[0].mxu0
    %v277 = vadd.f32 %v175, %v276
    %278 = vdwg.mxu0
    %279 = vmatprep.subr.mxu0 %v136
    %280 = vmatpush1.msra.mxu0 %v135
    %281 = vmatprep.subr.mxu0 %v140
    %282 = vmatpush1.msra.mxu0 %v139
    %283 = vmatprep.subr.mxu0 %v144
    %284 = vmatpush1.msra.mxu0 %v143
    %285 = vmatprep.subr.mxu0 %v148
    %286 = vmatpush1.msra.mxu0 %v147
    %287 = vmatprep.subr.mxu0 0.0
    %288 = vmatpush1.msra.mxu0 0.0
    %289 = vmatprep.subr.mxu0 0.0
    %290 = vmatpush1.msra.mxu0 0.0
    %291 = vmatprep.subr.mxu0 0.0
    %292 = vmatpush1.msra.mxu0 0.0
    %293 = vmatprep.subr.mxu0 0.0
    %294 = vmatpush1.msra.mxu0 0.0
    %295 = vmatprep.subr.mxu0 0.0
    %296 = vmatpush1.msra.mxu0 0.0
    %297 = vmatprep.subr.mxu0 0.0
    %298 = vmatpush1.msra.mxu0 0.0
    %299 = vmatprep.subr.mxu0 0.0
    %300 = vmatpush1.msra.mxu0 0.0
    %301 = vmatprep.subr.mxu0 0.0
    %302 = vmatpush1.msra.mxu0 0.0
    %303 = vmatprep.subr.mxu0 0.0
    %304 = vmatpush1.msra.mxu0 0.0
    %305 = vmatprep.subr.mxu0 0.0
    %306 = vmatpush1.msra.mxu0 0.0
    %307 = vmatprep.subr.mxu0 0.0
    %308 = vmatpush1.msra.mxu0 0.0
    %309 = vmatprep.subr.mxu0 0.0
    %310 = vmatpush1.msra.mxu0 0.0
    %311 = vmatprep.subr.mxu0 0.0
    %312 = vmatpush1.msra.mxu0 0.0
    %313 = vmatprep.subr.mxu0 0.0
    %314 = vmatpush1.msra.mxu0 0.0
    %315 = vmatprep.subr.mxu0 0.0
    %316 = vmatpush1.msra.mxu0 0.0
    %317 = vmatprep.subr.mxu0 0.0
    %318 = vmatpush1.msra.mxu0 0.0
    %319 = vmatprep.subr.mxu0 0.0
    %320 = vmatpush1.msra.mxu0 0.0
    %321 = vmatprep.subr.mxu0 0.0
    %322 = vmatpush1.msra.mxu0 0.0
    %323 = vmatprep.subr.mxu0 0.0
    %324 = vmatpush1.msra.mxu0 0.0
    %325 = vmatprep.subr.mxu0 0.0
    %326 = vmatpush1.msra.mxu0 0.0
    %327 = vmatprep.subr.mxu0 0.0
    %328 = vmatpush1.msra.mxu0 0.0
    %329 = vmatprep.subr.mxu0 0.0
    %330 = vmatpush1.msra.mxu0 0.0
    %331 = vmatprep.subr.mxu0 0.0
    %332 = vmatpush1.msra.mxu0 0.0
    %333 = vmatprep.subr.mxu0 0.0
    %334 = vmatpush1.msra.mxu0 0.0
    %335 = vmatprep.subr.mxu0 0.0
    %336 = vmatpush1.msra.mxu0 0.0
    %337 = vmatprep.subr.mxu0 0.0
    %338 = vmatpush1.msra.mxu0 0.0
    %339 = vmatprep.subr.mxu0 0.0
    %340 = vmatpush1.msra.mxu0 0.0
    %341 = vmatprep.subr.mxu0 0.0
    %342 = vmatpush1.msra.mxu0 0.0
    %343 = vmatprep.mubr.f32.mxu0 0.0
    %344 = vmatmul.mubr.f32.gmra.mrb[0].mxu0 %v179
    %v345 = vpop.f32.mrb[0].mxu0
    %v346 = vadd.f32 %v160, %v345
    %v347 = vpop.f32.mrb[0].mxu0
    %v348 = vadd.f32 %v160, %v347
    %349 = vmatprep.mubr.f32.mxu0 0.0
    %350 = vmatmul.mubr.f32.gmra.mrb[0].mxu0 %v182
    %v351 = vpop.f32.mrb[0].mxu0
    %v352 = vadd.f32 %v165, %v351
    %v353 = vpop.f32.mrb[0].mxu0
    %v354 = vadd.f32 %v165, %v353
    %355 = vmatprep.mubr.f32.mxu0 0.0
    %356 = vmatmul.mubr.f32.gmra.mrb[0].mxu0 %v185
    %v357 = vpop.f32.mrb[0].mxu0
    %v358 = vadd.f32 %v170, %v357
    %v359 = vpop.f32.mrb[0].mxu0
    %v360 = vadd.f32 %v170, %v359
    %361 = vmatprep.mubr.f32.mxu0 0.0
    %362 = vmatmul.mubr.f32.gmra.mrb[0].mxu0 %v188
    %v363 = vpop.f32.mrb[0].mxu0
    %v364 = vadd.f32 %v175, %v363
    %v365 = vpop.f32.mrb[0].mxu0
    %v366 = vadd.f32 %v175, %v365
    %367 = vdwg.mxu0
    %v368 = vtanh.pop %v257
    %v369 = vtanh.pop %v259
    %v370 = vtanh.pop %v346
    %v371 = vtanh.pop %v348
    %v372 = vtanh.pop %v263
    %v373 = vtanh.pop %v265
    %v374 = vtanh.pop %v352
    %v375 = vtanh.pop %v354
    %v376 = vtanh.pop %v269
    %v377 = vtanh.pop %v271
    %v378 = vtanh.pop %v358
    %v379 = vtanh.pop %v360
    %v380 = vtanh.pop %v275
    %v381 = vtanh.pop %v277
    %v382 = vtanh.pop %v364
    %v383 = vtanh.pop %v366
    %s384 = scalar_lea.vmem %s3, 32
    %v385 = vld [vmem:[%s384] sm:$0xff]
    %v386 = vld [vmem:[%s384 + $0x8] sm:$0xff]
    %v387 = vld [vmem:[%s384 + $0x10] sm:$0xff]
    %v388 = vld [vmem:[%s384 + $0x18] sm:$0xff]
    %s389 = scalar_lea.vmem %s4, 32
    %v390 = vld [vmem:[%s389] sm:$0xff]
    %v391 = vld [vmem:[%s389 + $0x8] sm:$0xff]
    %v392 = vld [vmem:[%s389 + $0x10] sm:$0xff]
    %v393 = vld [vmem:[%s389 + $0x18] sm:$0xff]
    %395 = vset.pattern.permute.xlu0 0
    %396 = vperm.xlu0 %395, %v390
    %v397 = vpop.permute.xlu0 %396
    %400 = vset.pattern.permute.xlu0 0
    %401 = vperm.xlu0 %400, %v391
    %v402 = vpop.permute.xlu0 %401
    %405 = vset.pattern.permute.xlu0 0
    %406 = vperm.xlu0 %405, %v392
    %v407 = vpop.permute.xlu0 %406
    %410 = vset.pattern.permute.xlu0 0
    %411 = vperm.xlu0 %410, %v393
    %v412 = vpop.permute.xlu0 %411
    %v415 = vsel %vm177, %v385, 0
    %v418 = vsel %vm177, %v386, 0
    %v421 = vsel %vm177, %v387, 0
    %v424 = vsel %vm177, %v388, 0
    %426 = vmatprep.subr.mxu0 %v369
    %427 = vmatpush1.msra.mxu0 %v368
    %428 = vmatprep.subr.mxu0 %v373
    %429 = vmatpush1.msra.mxu0 %v372
    %430 = vmatprep.subr.mxu0 %v377
    %431 = vmatpush1.msra.mxu0 %v376
    %432 = vmatprep.subr.mxu0 %v381
    %433 = vmatpush1.msra.mxu0 %v380
    %434 = vmatprep.subr.mxu0 0.0
    %435 = vmatpush1.msra.mxu0 0.0
    %436 = vmatprep.subr.mxu0 0.0
    %437 = vmatpush1.msra.mxu0 0.0
    %438 = vmatprep.subr.mxu0 0.0
    %439 = vmatpush1.msra.mxu0 0.0
    %440 = vmatprep.subr.mxu0 0.0
    %441 = vmatpush1.msra.mxu0 0.0
    %442 = vmatprep.subr.mxu0 0.0
    %443 = vmatpush1.msra.mxu0 0.0
    %444 = vmatprep.subr.mxu0 0.0
    %445 = vmatpush1.msra.mxu0 0.0
    %446 = vmatprep.subr.mxu0 0.0
    %447 = vmatpush1.msra.mxu0 0.0
    %448 = vmatprep.subr.mxu0 0.0
    %449 = vmatpush1.msra.mxu0 0.0
    %450 = vmatprep.subr.mxu0 0.0
    %451 = vmatpush1.msra.mxu0 0.0
    %452 = vmatprep.subr.mxu0 0.0
    %453 = vmatpush1.msra.mxu0 0.0
    %454 = vmatprep.subr.mxu0 0.0
    %455 = vmatpush1.msra.mxu0 0.0
    %456 = vmatprep.subr.mxu0 0.0
    %457 = vmatpush1.msra.mxu0 0.0
    %458 = vmatprep.subr.mxu0 0.0
    %459 = vmatpush1.msra.mxu0 0.0
    %460 = vmatprep.subr.mxu0 0.0
    %461 = vmatpush1.msra.mxu0 0.0
    %462 = vmatprep.subr.mxu0 0.0
    %463 = vmatpush1.msra.mxu0 0.0
    %464 = vmatprep.subr.mxu0 0.0
    %465 = vmatpush1.msra.mxu0 0.0
    %466 = vmatprep.subr.mxu0 0.0
    %467 = vmatpush1.msra.mxu0 0.0
    %468 = vmatprep.subr.mxu0 0.0
    %469 = vmatpush1.msra.mxu0 0.0
    %470 = vmatprep.subr.mxu0 0.0
    %471 = vmatpush1.msra.mxu0 0.0
    %472 = vmatprep.subr.mxu0 0.0
    %473 = vmatpush1.msra.mxu0 0.0
    %474 = vmatprep.subr.mxu0 0.0
    %475 = vmatpush1.msra.mxu0 0.0
    %476 = vmatprep.subr.mxu0 0.0
    %477 = vmatpush1.msra.mxu0 0.0
    %478 = vmatprep.subr.mxu0 0.0
    %479 = vmatpush1.msra.mxu0 0.0
    %480 = vmatprep.subr.mxu0 0.0
    %481 = vmatpush1.msra.mxu0 0.0
    %482 = vmatprep.subr.mxu0 0.0
    %483 = vmatpush1.msra.mxu0 0.0
    %484 = vmatprep.subr.mxu0 0.0
    %485 = vmatpush1.msra.mxu0 0.0
    %486 = vmatprep.subr.mxu0 0.0
    %487 = vmatpush1.msra.mxu0 0.0
    %488 = vmatprep.subr.mxu0 0.0
    %489 = vmatpush1.msra.mxu0 0.0
    %490 = vmatprep.mubr.f32.mxu0 0.0
    %491 = vmatmul.mubr.f32.gmra.mrb[0].mxu0 %v415
    %v492 = vpop.f32.mrb[0].mxu0
    %v493 = vadd.f32 %v397, %v492
    %v494 = vpop.f32.mrb[0].mxu0
    %v495 = vadd.f32 %v397, %v494
    %496 = vmatprep.mubr.f32.mxu0 0.0
    %497 = vmatmul.mubr.f32.gmra.mrb[0].mxu0 %v418
    %v498 = vpop.f32.mrb[0].mxu0
    %v499 = vadd.f32 %v402, %v498
    %v500 = vpop.f32.mrb[0].mxu0
    %v501 = vadd.f32 %v402, %v500
    %502 = vmatprep.mubr.f32.mxu0 0.0
    %503 = vmatmul.mubr.f32.gmra.mrb[0].mxu0 %v421
    %v504 = vpop.f32.mrb[0].mxu0
    %v505 = vadd.f32 %v407, %v504
    %v506 = vpop.f32.mrb[0].mxu0
    %v507 = vadd.f32 %v407, %v506
    %508 = vmatprep.mubr.f32.mxu0 0.0
    %509 = vmatmul.mubr.f32.gmra.mrb[0].mxu0 %v424
    %v510 = vpop.f32.mrb[0].mxu0
    %v511 = vadd.f32 %v412, %v510
    %v512 = vpop.f32.mrb[0].mxu0
    %v513 = vadd.f32 %v412, %v512
    %514 = vdwg.mxu0
    %515 = vmatprep.subr.mxu0 %v371
    %516 = vmatpush1.msra.mxu0 %v370
    %517 = vmatprep.subr.mxu0 %v375
    %518 = vmatpush1.msra.mxu0 %v374
    %519 = vmatprep.subr.mxu0 %v379
    %520 = vmatpush1.msra.mxu0 %v378
    %521 = vmatprep.subr.mxu0 %v383
    %522 = vmatpush1.msra.mxu0 %v382
    %523 = vmatprep.subr.mxu0 0.0
    %524 = vmatpush1.msra.mxu0 0.0
    %525 = vmatprep.subr.mxu0 0.0
    %526 = vmatpush1.msra.mxu0 0.0
    %527 = vmatprep.subr.mxu0 0.0
    %528 = vmatpush1.msra.mxu0 0.0
    %529 = vmatprep.subr.mxu0 0.0
    %530 = vmatpush1.msra.mxu0 0.0
    %531 = vmatprep.subr.mxu0 0.0
    %532 = vmatpush1.msra.mxu0 0.0
    %533 = vmatprep.subr.mxu0 0.0
    %534 = vmatpush1.msra.mxu0 0.0
    %535 = vmatprep.subr.mxu0 0.0
    %536 = vmatpush1.msra.mxu0 0.0
    %537 = vmatprep.subr.mxu0 0.0
    %538 = vmatpush1.msra.mxu0 0.0
    %539 = vmatprep.subr.mxu0 0.0
    %540 = vmatpush1.msra.mxu0 0.0
    %541 = vmatprep.subr.mxu0 0.0
    %542 = vmatpush1.msra.mxu0 0.0
    %543 = vmatprep.subr.mxu0 0.0
    %544 = vmatpush1.msra.mxu0 0.0
    %545 = vmatprep.subr.mxu0 0.0
    %546 = vmatpush1.msra.mxu0 0.0
    %547 = vmatprep.subr.mxu0 0.0
    %548 = vmatpush1.msra.mxu0 0.0
    %549 = vmatprep.subr.mxu0 0.0
    %550 = vmatpush1.msra.mxu0 0.0
    %551 = vmatprep.subr.mxu0 0.0
    %552 = vmatpush1.msra.mxu0 0.0
    %553 = vmatprep.subr.mxu0 0.0
    %554 = vmatpush1.msra.mxu0 0.0
    %555 = vmatprep.subr.mxu0 0.0
    %556 = vmatpush1.msra.mxu0 0.0
    %557 = vmatprep.subr.mxu0 0.0
    %558 = vmatpush1.msra.mxu0 0.0
    %559 = vmatprep.subr.mxu0 0.0
    %560 = vmatpush1.msra.mxu0 0.0
    %561 = vmatprep.subr.mxu0 0.0
    %562 = vmatpush1.msra.mxu0 0.0
    %563 = vmatprep.subr.mxu0 0.0
    %564 = vmatpush1.msra.mxu0 0.0
    %565 = vmatprep.subr.mxu0 0.0
    %566 = vmatpush1.msra.mxu0 0.0
    %567 = vmatprep.subr.mxu0 0.0
    %568 = vmatpush1.msra.mxu0 0.0
    %569 = vmatprep.subr.mxu0 0.0
    %570 = vmatpush1.msra.mxu0 0.0
    %571 = vmatprep.subr.mxu0 0.0
    %572 = vmatpush1.msra.mxu0 0.0
    %573 = vmatprep.subr.mxu0 0.0
    %574 = vmatpush1.msra.mxu0 0.0
    %575 = vmatprep.subr.mxu0 0.0
    %576 = vmatpush1.msra.mxu0 0.0
    %577 = vmatprep.subr.mxu0 0.0
    %578 = vmatpush1.msra.mxu0 0.0
    %579 = vmatprep.mubr.f32.mxu0 0.0
    %580 = vmatmul.mubr.f32.gmra.mrb[0].mxu0 %v415
    %v581 = vpop.f32.mrb[0].mxu0
    %v582 = vadd.f32 %v397, %v581
    %v583 = vpop.f32.mrb[0].mxu0
    %v584 = vadd.f32 %v397, %v583
    %585 = vmatprep.mubr.f32.mxu0 0.0
    %586 = vmatmul.mubr.f32.gmra.mrb[0].mxu0 %v418
    %v587 = vpop.f32.mrb[0].mxu0
    %v588 = vadd.f32 %v402, %v587
    %v589 = vpop.f32.mrb[0].mxu0
    %v590 = vadd.f32 %v402, %v589
    %591 = vmatprep.mubr.f32.mxu0 0.0
    %592 = vmatmul.mubr.f32.gmra.mrb[0].mxu0 %v421
    %v593 = vpop.f32.mrb[0].mxu0
    %v594 = vadd.f32 %v407, %v593
    %v595 = vpop.f32.mrb[0].mxu0
    %v596 = vadd.f32 %v407, %v595
    %597 = vmatprep.mubr.f32.mxu0 0.0
    %598 = vmatmul.mubr.f32.gmra.mrb[0].mxu0 %v424
    %v599 = vpop.f32.mrb[0].mxu0
    %v600 = vadd.f32 %v412, %v599
    %v601 = vpop.f32.mrb[0].mxu0
    %v602 = vadd.f32 %v412, %v601
    %603 = vdwg.mxu0
    %v604 = vtanh.pop %v493
    %v605 = vtanh.pop %v495
    %v606 = vtanh.pop %v582
    %v607 = vtanh.pop %v584
    %v608 = vtanh.pop %v499
    %v609 = vtanh.pop %v501
    %v610 = vtanh.pop %v588
    %v611 = vtanh.pop %v590
    %v612 = vtanh.pop %v505
    %v613 = vtanh.pop %v507
    %v614 = vtanh.pop %v594
    %v615 = vtanh.pop %v596
    %v616 = vtanh.pop %v511
    %v617 = vtanh.pop %v513
    %v618 = vtanh.pop %v600
    %v619 = vtanh.pop %v602
    %621 = vset.pattern.permute.xlu0 0
    %622 = vperm.xlu0 %621, %v38
    %v623 = vpop.permute.xlu0 %622
    %v625 = vlaneseq
    %v626 = vshrl.u32 %v625, 7
    %v627 = vsub.s32 0, %v626
    %v628 = vrot.slane %v623, %v627
    %v630 = vsel %vm177, %v37, 0
    %632 = vmatprep.subr.mxu0 %v605
    %633 = vmatpush1.msra.mxu0 %v604
    %634 = vmatprep.subr.mxu0 %v609
    %635 = vmatpush1.msra.mxu0 %v608
    %636 = vmatprep.subr.mxu0 %v613
    %637 = vmatpush1.msra.mxu0 %v612
    %638 = vmatprep.subr.mxu0 %v617
    %639 = vmatpush1.msra.mxu0 %v616
    %640 = vmatprep.subr.mxu0 0.0
    %641 = vmatpush1.msra.mxu0 0.0
    %642 = vmatprep.subr.mxu0 0.0
    %643 = vmatpush1.msra.mxu0 0.0
    %644 = vmatprep.subr.mxu0 0.0
    %645 = vmatpush1.msra.mxu0 0.0
    %646 = vmatprep.subr.mxu0 0.0
    %647 = vmatpush1.msra.mxu0 0.0
    %648 = vmatprep.subr.mxu0 0.0
    %649 = vmatpush1.msra.mxu0 0.0
    %650 = vmatprep.subr.mxu0 0.0
    %651 = vmatpush1.msra.mxu0 0.0
    %652 = vmatprep.subr.mxu0 0.0
    %653 = vmatpush1.msra.mxu0 0.0
    %654 = vmatprep.subr.mxu0 0.0
    %655 = vmatpush1.msra.mxu0 0.0
    %656 = vmatprep.subr.mxu0 0.0
    %657 = vmatpush1.msra.mxu0 0.0
    %658 = vmatprep.subr.mxu0 0.0
    %659 = vmatpush1.msra.mxu0 0.0
    %660 = vmatprep.subr.mxu0 0.0
    %661 = vmatpush1.msra.mxu0 0.0
    %662 = vmatprep.subr.mxu0 0.0
    %663 = vmatpush1.msra.mxu0 0.0
    %664 = vmatprep.subr.mxu0 0.0
    %665 = vmatpush1.msra.mxu0 0.0
    %666 = vmatprep.subr.mxu0 0.0
    %667 = vmatpush1.msra.mxu0 0.0
    %668 = vmatprep.subr.mxu0 0.0
    %669 = vmatpush1.msra.mxu0 0.0
    %670 = vmatprep.subr.mxu0 0.0
    %671 = vmatpush1.msra.mxu0 0.0
    %672 = vmatprep.subr.mxu0 0.0
    %673 = vmatpush1.msra.mxu0 0.0
    %674 = vmatprep.subr.mxu0 0.0
    %675 = vmatpush1.msra.mxu0 0.0
    %676 = vmatprep.subr.mxu0 0.0
    %677 = vmatpush1.msra.mxu0 0.0
    %678 = vmatprep.subr.mxu0 0.0
    %679 = vmatpush1.msra.mxu0 0.0
    %680 = vmatprep.subr.mxu0 0.0
    %681 = vmatpush1.msra.mxu0 0.0
    %682 = vmatprep.subr.mxu0 0.0
    %683 = vmatpush1.msra.mxu0 0.0
    %684 = vmatprep.subr.mxu0 0.0
    %685 = vmatpush1.msra.mxu0 0.0
    %686 = vmatprep.subr.mxu0 0.0
    %687 = vmatpush1.msra.mxu0 0.0
    %688 = vmatprep.subr.mxu0 0.0
    %689 = vmatpush1.msra.mxu0 0.0
    %690 = vmatprep.subr.mxu0 0.0
    %691 = vmatpush1.msra.mxu0 0.0
    %692 = vmatprep.subr.mxu0 0.0
    %693 = vmatpush1.msra.mxu0 0.0
    %694 = vmatprep.subr.mxu0 0.0
    %695 = vmatpush1.msra.mxu0 0.0
    %696 = vmatprep.mubr.f32.mxu0 0.0
    %697 = vmatmul.mubr.f32.gmra.mrb[0].mxu0 %v630
    %v698 = vpop.f32.mrb[0].mxu0
    %v699 = vadd.f32 %v628, %v698
    %v700 = vpop.f32.mrb[0].mxu0
    %v701 = vadd.f32 %v628, %v700
    %702 = vdwg.mxu0
    %703 = vmatprep.subr.mxu0 %v607
    %704 = vmatpush1.msra.mxu0 %v606
    %705 = vmatprep.subr.mxu0 %v611
    %706 = vmatpush1.msra.mxu0 %v610
    %707 = vmatprep.subr.mxu0 %v615
    %708 = vmatpush1.msra.mxu0 %v614
    %709 = vmatprep.subr.mxu0 %v619
    %710 = vmatpush1.msra.mxu0 %v618
    %711 = vmatprep.subr.mxu0 0.0
    %712 = vmatpush1.msra.mxu0 0.0
    %713 = vmatprep.subr.mxu0 0.0
    %714 = vmatpush1.msra.mxu0 0.0
    %715 = vmatprep.subr.mxu0 0.0
    %716 = vmatpush1.msra.mxu0 0.0
    %717 = vmatprep.subr.mxu0 0.0
    %718 = vmatpush1.msra.mxu0 0.0
    %719 = vmatprep.subr.mxu0 0.0
    %720 = vmatpush1.msra.mxu0 0.0
    %721 = vmatprep.subr.mxu0 0.0
    %722 = vmatpush1.msra.mxu0 0.0
    %723 = vmatprep.subr.mxu0 0.0
    %724 = vmatpush1.msra.mxu0 0.0
    %725 = vmatprep.subr.mxu0 0.0
    %726 = vmatpush1.msra.mxu0 0.0
    %727 = vmatprep.subr.mxu0 0.0
    %728 = vmatpush1.msra.mxu0 0.0
    %729 = vmatprep.subr.mxu0 0.0
    %730 = vmatpush1.msra.mxu0 0.0
    %731 = vmatprep.subr.mxu0 0.0
    %732 = vmatpush1.msra.mxu0 0.0
    %733 = vmatprep.subr.mxu0 0.0
    %734 = vmatpush1.msra.mxu0 0.0
    %735 = vmatprep.subr.mxu0 0.0
    %736 = vmatpush1.msra.mxu0 0.0
    %737 = vmatprep.subr.mxu0 0.0
    %738 = vmatpush1.msra.mxu0 0.0
    %739 = vmatprep.subr.mxu0 0.0
    %740 = vmatpush1.msra.mxu0 0.0
    %741 = vmatprep.subr.mxu0 0.0
    %742 = vmatpush1.msra.mxu0 0.0
    %743 = vmatprep.subr.mxu0 0.0
    %744 = vmatpush1.msra.mxu0 0.0
    %745 = vmatprep.subr.mxu0 0.0
    %746 = vmatpush1.msra.mxu0 0.0
    %747 = vmatprep.subr.mxu0 0.0
    %748 = vmatpush1.msra.mxu0 0.0
    %749 = vmatprep.subr.mxu0 0.0
    %750 = vmatpush1.msra.mxu0 0.0
    %751 = vmatprep.subr.mxu0 0.0
    %752 = vmatpush1.msra.mxu0 0.0
    %753 = vmatprep.subr.mxu0 0.0
    %754 = vmatpush1.msra.mxu0 0.0
    %755 = vmatprep.subr.mxu0 0.0
    %756 = vmatpush1.msra.mxu0 0.0
    %757 = vmatprep.subr.mxu0 0.0
    %758 = vmatpush1.msra.mxu0 0.0
    %759 = vmatprep.subr.mxu0 0.0
    %760 = vmatpush1.msra.mxu0 0.0
    %761 = vmatprep.subr.mxu0 0.0
    %762 = vmatpush1.msra.mxu0 0.0
    %763 = vmatprep.subr.mxu0 0.0
    %764 = vmatpush1.msra.mxu0 0.0
    %765 = vmatprep.subr.mxu0 0.0
    %766 = vmatpush1.msra.mxu0 0.0
    %767 = vmatprep.mubr.f32.mxu0 0.0
    %768 = vmatmul.mubr.f32.gmra.mrb[0].mxu0 %v630
    %v769 = vpop.f32.mrb[0].mxu0
    %v770 = vadd.f32 %v628, %v769
    %v771 = vpop.f32.mrb[0].mxu0
    %v772 = vadd.f32 %v628, %v771
    %773 = vdwg.mxu0
    %v778 = vcombine.low %v699, %v701
    %v779 = vcombine.low %v770, %v772
    %v781 = vunpack.c.l.s4 1966171168
    %v782 = vunpack.c.0.s8 %v781
    %v783 = vlaneseq
    %v784 = vshrl.u32 %v783, 7
    %v785 = vsub.s32 %v782, %v784
    %v786 = vrot.slane %v778, %v785
    %v788 = vunpack.c.l.s4 1966171168
    %v789 = vunpack.c.0.s8 %v788
    %v790 = vlaneseq
    %v791 = vshrl.u32 %v790, 7
    %v792 = vsub.s32 %v789, %v791
    %v793 = vrot.slane %v779, %v792
    %v794 = vcombine.low %v786, %v793
    %v796 = vunpack.c.l.s4 1966171168
    %v797 = vunpack.c.0.s8 %v796
    %v798 = vlaneseq
    %v799 = vshrl.u32 %v798, 7
    %v800 = vsub.s32 %v797, %v799
    %v801 = vrot.slane %v794, %v800
    %v803 = vlaneseq
    %vm804 = vcmp.ge.s32.totalorder %v803, 0
    %vm805 = vcmp.lt.s32.totalorder %v803, 512
    %vm806 = vmand %vm804, %vm805
    %807 = vst.msk [vmem:[#allocation3] sm:$0xf] %vm806, %v801
    // Predicated region
    $region30: #{tpu_custom_call.1} parent=1 // pred_check
      _
    $region31: #{tpu_custom_call.1} parent=1 // pred_check_branch
      %809 = sbr.rel (0) target = $region33
    $region32: #{tpu_custom_call.1} parent=1 // pred_region
      %s811 = ssub.s32 64, 64
      %812 = vsyncadd [#allocation4], %s811
      %s814 = sshll.u32 [#allocation3], 4
      %s815 = int_to_ptr.vmem [resolvable:$true] %s814
      %817 = dma.vmem_to_hbm [thread:$0]  %s815, 64, %s7, [#allocation4]
    $region33: #{tpu_custom_call.1} parent=1 // pred_fallthru
      _
    // Predicated region
    $region34: #{tpu_custom_call.1} parent=1 // pred_check
      _
    $region35: #{tpu_custom_call.1} parent=1 // pred_check_branch
      %819 = sbr.rel (0) target = $region37
    $region36: #{tpu_custom_call.1} parent=1 // pred_region
      %820 = dma.done [#allocation4], 64
    $region37: #{tpu_custom_call.1} parent=1 // pred_fallthru
      _
    %821 = vsyncpa [#allocation4], 1

</llo_original>
